<compile_context>
chip_gen: v5e
topology: v5e:2x2
jax: 0.10.0
libtpu: 0.0.40
codegen_flags: <defaults>
</compile_context>

<pallas_src>
import functools

import jax
import jax.numpy as jnp
from jax import lax
from jax.experimental import pallas as pl
from jax.experimental.pallas import tpu as pltpu


def ttoa_kernel(al_ref, ah_ref, w12t_ref, b12_ref, wd_ref, bd_ref, out_ref,
                *, H, W, TH):
    C = ah_ref.shape[1]
    HW = H * W
    PW = TH * W                     # lanes per output tile
    NT = H // TH                    # tiles along H
    BW = min(-(-W // 128) * 128, HW)  # lane-aligned window for one boundary row
    f32 = jnp.float32

    t = pl.program_id(1)

    w12t = w12t_ref[...]            # (C, C) folded 1x1 preprocess, (out, in)
    b12 = b12_ref[...]              # (C, 1)

    # ---- a_high tile: folded 1x1 preprocess (channel matmul, lane-dense) ----
    high = jnp.dot(w12t, ah_ref[0].astype(f32), preferred_element_type=f32) + b12

    # ---- a_low: slice tile + boundary rows from the per-batch resident image ----
    if NT == 1:
        # whole image in one tile: static, trivially in-bounds starts
        base = 0
        up_start = 0
        dn_start = HW - BW
    else:
        # NT > 1 implies PW, BW, HW are all multiples of 128 -> aligned dynamic ds
        base = pl.multiple_of(t * PW, 128)
        up_start = pl.multiple_of(jnp.maximum(base - BW, 0), 128)
        dn_start = pl.multiple_of(jnp.minimum(base + PW, HW - BW), 128)

    center = al_ref[0, :, pl.ds(base, PW)].astype(f32)               # (C, PW)
    low = jnp.dot(w12t, center, preferred_element_type=f32) + b12    # (C, PW)

    # Boundary rows (row above / below the tile).  The directional convs
    # zero-pad the *preprocessed* feature map, so at the image border the halo
    # row must be exactly zero (not preprocess(0) = bias): gate with a scalar
    # select over only (C, W) elements — interior tiles pay nothing tile-wide.
    up_raw = al_ref[0, :, pl.ds(up_start, BW)][:, BW - W:BW].astype(f32)
    up_pre = jnp.dot(w12t, up_raw, preferred_element_type=f32) + b12
    up_pre = jnp.where(t == 0, 0.0, up_pre)                           # (C, W)

    dn_raw = al_ref[0, :, pl.ds(dn_start, BW)][:, 0:W].astype(f32)
    dn_pre = jnp.dot(w12t, dn_raw, preferred_element_type=f32) + b12
    dn_pre = jnp.where(t == NT - 1, 0.0, dn_pre)                      # (C, W)

    # ---- shifted conv taps from the in-register halo [up | low | dn] ----
    low_halo = jnp.concatenate([up_pre, low, dn_pre], axis=1)         # (C, PW+2W)
    x_up = low_halo[:, 0:PW]                                          # row h-1
    x_dn = low_halo[:, 2 * W:2 * W + PW]                              # row h+1
    w_idx = lax.broadcasted_iota(jnp.int32, (1, PW), 1) % W
    x_lf = jnp.where(w_idx != 0, low_halo[:, W - 1:W - 1 + PW], 0.0)  # col w-1
    x_rt = jnp.where(w_idx != W - 1, low_halo[:, W + 1:W + 1 + PW], 0.0)

    # ---- directional (3,1) and (1,3) convs: six CxC dots, no zero blocks ----
    col = (jnp.dot(wd_ref[0], x_up, preferred_element_type=f32)
           + jnp.dot(wd_ref[1], low, preferred_element_type=f32)
           + jnp.dot(wd_ref[2], x_dn, preferred_element_type=f32)
           + bd_ref[0])
    row = (jnp.dot(wd_ref[3], x_lf, preferred_element_type=f32)
           + jnp.dot(wd_ref[4], low, preferred_element_type=f32)
           + jnp.dot(wd_ref[5], x_rt, preferred_element_type=f32)
           + bd_ref[1])
    gate = jax.nn.sigmoid(col) + jax.nn.sigmoid(row)                  # (C, PW)

    out_ref[0] = (2.0 * low + gate * high).astype(out_ref.dtype)


def _vmem_capacity_bytes():
    """Hardware-queried VMEM capacity; conservative fallback = v7x (64 MiB)."""
    try:
        cap = int(pltpu.get_tpu_info().vmem_capacity_bytes)
        if cap > 0:
            return cap
    except Exception:
        pass
    return 64 * 1024 * 1024


def _pick_tile_h(B, C, H, W, vmem_budget_bytes):
    """Largest TH that (a) divides H, (b) keeps TH*W a multiple of 128 (full-width
    stores) or covers the whole image, (c) fits the double-buffered working set
    in the VMEM byte budget, and (d) leaves >= 2 grid steps (preferably an even
    number) when B == 1 so both v7x TensorCores get work."""
    HW = H * W
    valid = [th for th in range(1, H + 1)
             if H % th == 0 and ((th * W) % 128 == 0 or th == H)]

    def vmem_use(th):
        pw = th * W
        resident = 2 * 4 * C * HW          # double-buffered per-batch a_low (f32)
        streamed = 2 * 4 * C * pw * 2      # double-buffered a_high tile + out tile
        interm = 14 * 4 * C * pw           # low/high/halo/taps/col/row f32 values
        weights = 2 * 4 * (8 * C * C + 4 * C)
        return resident + streamed + interm + weights

    fitting = [th for th in valid if vmem_use(th) <= vmem_budget_bytes]
    cands = fitting if fitting else [min(valid)]
    if B == 1:
        multi = [th for th in cands if H // th >= 2] or cands
        even = [th for th in multi if (H // th) % 2 == 0] or multi
        cands = even
    return max(cands)


def ttoa_pallas(a_low_nchw, a_high_nchw, params, *, tile_h=None):
    B, C, H, W = a_low_nchw.shape
    HW = H * W

    vmem_cap = _vmem_capacity_bytes()
    vmem_limit = max(32 * 1024 * 1024, min((vmem_cap * 3) // 4, 96 * 1024 * 1024))
    vmem_limit = min(vmem_limit, vmem_cap)

    TH = (_pick_tile_h(B, C, H, W, (vmem_limit * 17) // 20)
          if tile_h is None else tile_h)
    assert H % TH == 0 and (TH == H or (TH * W) % 128 == 0)
    n_t = H // TH
    PW = TH * W

    # flat lane-dense layout: pure reshape from NCHW (no transpose, no halo copy)
    al_flat = a_low_nchw.reshape(B, C, HW)
    ah_flat = a_high_nchw.reshape(B, C, HW)

    # --- fused weights, built once wrapper-side ---
    # folded 1x1 preprocess (exact: no nonlinearity between the two convs)
    w12t = (params["w1"] @ params["w2"]).T                              # (Cout, Cin)
    b12 = (params["b1"] @ params["w2"] + params["b2"]).reshape(C, 1)
    # directional conv weights, (out, in), tap order [up, center, dn, lf, center, rt]
    wc, wr = params["wc"], params["wr"]
    w_dir = jnp.stack([wc[0].T, wc[1].T, wc[2].T,
                       wr[0].T, wr[1].T, wr[2].T], axis=0)              # (6, C, C)
    b_dir = jnp.stack([params["bc"].reshape(C, 1),
                       params["br"].reshape(C, 1)], axis=0)             # (2, C, 1)

    grid_spec = pltpu.PrefetchScalarGridSpec(
        num_scalar_prefetch=0,
        grid=(B, n_t),
        in_specs=[
            pl.BlockSpec((1, C, HW), lambda b, t: (b, 0, 0)),   # a_low resident / batch
            pl.BlockSpec((1, C, PW), lambda b, t: (b, 0, t)),   # a_high tile
            pl.BlockSpec((C, C), lambda b, t: (0, 0)),          # folded 1x1 weight
            pl.BlockSpec((C, 1), lambda b, t: (0, 0)),          # folded 1x1 bias
            pl.BlockSpec((6, C, C), lambda b, t: (0, 0, 0)),    # directional weights
            pl.BlockSpec((2, C, 1), lambda b, t: (0, 0, 0)),    # directional biases
        ],
        out_specs=pl.BlockSpec((1, C, PW), lambda b, t: (b, 0, t)),
    )

    kernel = functools.partial(ttoa_kernel, H=H, W=W, TH=TH)
    out_flat = pl.pallas_call(
        kernel,
        out_shape=jax.ShapeDtypeStruct((B, C, HW), jnp.float32),
        grid_spec=grid_spec,
        compiler_params=pltpu.CompilerParams(
            dimension_semantics=("parallel", "parallel"),
            vmem_limit_bytes=int(vmem_limit)),
    )(al_flat, ah_flat, w12t, b12, w_dir, b_dir)
    return out_flat.reshape(B, C, H, W)


def ttoa_reference(a_low_nchw, a_high_nchw, p):
    """Pure-JAX reference (unfused preprocess, conv_general_dilated), NCHW."""
    def pre(x):
        x = jnp.einsum("bchw,cd->bdhw", x, p["w1"]) + p["b1"][0][None, :, None, None]
        return jnp.einsum("bchw,cd->bdhw", x, p["w2"]) + p["b2"][0][None, :, None, None]

    low = pre(a_low_nchw)
    high = pre(a_high_nchw)
    dn = ("NCHW", "HWIO", "NCHW")
    w_col = p["wc"][:, None, :, :]   # (kh, 1, Ci, Co)
    w_row = p["wr"][None, :, :, :]   # (1, kw, Ci, Co)
    col = lax.conv_general_dilated(low, w_col, (1, 1), padding=((1, 1), (0, 0)),
                                   dimension_numbers=dn) + p["bc"][0][None, :, None, None]
    row = lax.conv_general_dilated(low, w_row, (1, 1), padding=((0, 0), (1, 1)),
                                   dimension_numbers=dn) + p["br"][0][None, :, None, None]
    return 2.0 * low + (jax.nn.sigmoid(col) + jax.nn.sigmoid(row)) * high


def init_params(key, C):
    Ch = C // 2
    ks = jax.random.split(key, 8)
    s = 0.3
    return {
        "w1": s * jax.random.normal(ks[0], (C, Ch), jnp.float32),    # (Cin, Cout)
        "b1": s * jax.random.normal(ks[1], (1, Ch), jnp.float32),
        "w2": s * jax.random.normal(ks[2], (Ch, C), jnp.float32),
        "b2": s * jax.random.normal(ks[3], (1, C), jnp.float32),
        "wc": s * jax.random.normal(ks[4], (3, C, C), jnp.float32),  # [kh, Ci, Co]
        "bc": s * jax.random.normal(ks[5], (1, C), jnp.float32),
        "wr": s * jax.random.normal(ks[6], (3, C, C), jnp.float32),  # [kw, Ci, Co]
        "br": s * jax.random.normal(ks[7], (1, C), jnp.float32),
    }


if __name__ == "__main__":
    B, C, H, W = 2, 4, 16, 16
    key = jax.random.PRNGKey(0)
    k_low, k_high, k_p = jax.random.split(key, 3)

    # PyTorch-style NCHW inputs (kernel works directly in channel-major layout).
    a_low = jax.random.normal(k_low, (B, C, H, W), jnp.float32)
    a_high = jax.random.normal(k_high, (B, C, H, W), jnp.float32)
    params = init_params(k_p, C)

    ref = ttoa_reference(a_low, a_high, params)

    # multi-tile path: grid (B, 2), exercises the cross-tile boundary rows
    out_tiled = jax.block_until_ready(ttoa_pallas(a_low, a_high, params, tile_h=8))
    # auto-picked tile (byte/VMEM-based picker; whole image per tile at this size)
    out_auto = jax.block_until_ready(ttoa_pallas(a_low, a_high, params))

    for name, out in (("tiled", out_tiled), ("auto", out_auto)):
        if not jnp.allclose(out, ref, atol=1e-4, rtol=1e-4):
            err = float(jnp.max(jnp.abs(out - ref)))
            raise AssertionError(f"Pallas TTOA ({name}) mismatch, max abs err={err}")

    print("KERNEL_OK")
</pallas_src>

<mosaic_0001>
module attributes {stable_mosaic.version = 11 : i64} {
  func.func @ttoa_kernel(%arg0: i32, %arg1: i32, %arg2: memref<1x4x256xf32, #tpu.memory_space<vmem>>, %arg3: memref<1x4x128xf32, #tpu.memory_space<vmem>>, %arg4: memref<4x4xf32, #tpu.memory_space<vmem>>, %arg5: memref<4x1xf32, #tpu.memory_space<vmem>>, %arg6: memref<6x4x4xf32, #tpu.memory_space<vmem>>, %arg7: memref<2x4x1xf32, #tpu.memory_space<vmem>>, %arg8: memref<1x4x128xf32, #tpu.memory_space<vmem>>) attributes {dimension_semantics = [#tpu.dimension_semantics<parallel>, #tpu.dimension_semantics<parallel>], iteration_bounds = array<i64: 2, 2>, scalar_prefetch = 0 : i64, scratch_operands = 0 : i64, tpu.core_type = #tpu.core_type<tc>, window_params = [{transform_indices = @transform_0, window_bounds = array<i64: 1, 4, 256>}, {transform_indices = @transform_1, window_bounds = array<i64: 1, 4, 128>}, {pipeline_mode = #tpu.pipeline_mode<synchronous>, transform_indices = @transform_2, window_bounds = array<i64: 4, 4>}, {pipeline_mode = #tpu.pipeline_mode<synchronous>, transform_indices = @transform_3, window_bounds = array<i64: 4, 1>}, {pipeline_mode = #tpu.pipeline_mode<synchronous>, transform_indices = @transform_4, window_bounds = array<i64: 6, 4, 4>}, {pipeline_mode = #tpu.pipeline_mode<synchronous>, transform_indices = @transform_5, window_bounds = array<i64: 2, 4, 1>}, {transform_indices = @transform_6, window_bounds = array<i64: 1, 4, 128>}]} {
    %c0 = arith.constant 0 : index
    %c0_0 = arith.constant 0 : index
    %0 = vector.load %arg4[%c0, %c0_0] : memref<4x4xf32, #tpu.memory_space<vmem>>, vector<4x4xf32>
    %c0_1 = arith.constant 0 : index
    %c0_2 = arith.constant 0 : index
    %1 = vector.load %arg5[%c0_1, %c0_2] : memref<4x1xf32, #tpu.memory_space<vmem>>, vector<4x1xf32>
    %c0_3 = arith.constant 0 : index
    %c0_4 = arith.constant 0 : index
    %c0_5 = arith.constant 0 : index
    %2 = vector.load %arg3[%c0_3, %c0_4, %c0_5] : memref<1x4x128xf32, #tpu.memory_space<vmem>>, vector<1x4x128xf32>
    %3 = vector.shape_cast %2 : vector<1x4x128xf32> to vector<4x128xf32>
    %cst = arith.constant dense<0.000000e+00> : vector<4x128xf32>
    %4 = tpu.matmul %0, %3, %cst {dimension_numbers = #tpu.dot_dimension_numbers<[1], [0], [0], [1], [0, 0, 1, 1], [], []>} : vector<4x4xf32>, vector<4x128xf32>, vector<4x128xf32> -> vector<4x128xf32>
    %5 = vector.broadcast %1 : vector<4x1xf32> to vector<4x128xf32>
    %6 = arith.addf %4, %5 : vector<4x128xf32>
    %c128_i32 = arith.constant 128 : i32
    %7 = arith.muli %arg1, %c128_i32 : i32
    %8 = tpu.assume_multiple %7, 128 : i32
    %c128_i32_6 = arith.constant 128 : i32
    %9 = arith.subi %8, %c128_i32_6 : i32
    %c0_i32 = arith.constant 0 : i32
    %10 = arith.maxsi %9, %c0_i32 : i32
    %11 = tpu.assume_multiple %10, 128 : i32
    %c128_i32_7 = arith.constant 128 : i32
    %12 = arith.addi %8, %c128_i32_7 : i32
    %c128_i32_8 = arith.constant 128 : i32
    %13 = arith.minsi %12, %c128_i32_8 : i32
    %14 = tpu.assume_multiple %13, 128 : i32
    %c0_9 = arith.constant 0 : index
    %c0_10 = arith.constant 0 : index
    %15 = arith.index_cast %8 : i32 to index
    %16 = vector.load %arg2[%c0_9, %c0_10, %15] : memref<1x4x256xf32, #tpu.memory_space<vmem>>, vector<1x4x128xf32>
    %17 = vector.shape_cast %16 : vector<1x4x128xf32> to vector<4x128xf32>
    %cst_11 = arith.constant dense<0.000000e+00> : vector<4x128xf32>
    %18 = tpu.matmul %0, %17, %cst_11 {dimension_numbers = #tpu.dot_dimension_numbers<[1], [0], [0], [1], [0, 0, 1, 1], [], []>} : vector<4x4xf32>, vector<4x128xf32>, vector<4x128xf32> -> vector<4x128xf32>
    %19 = vector.broadcast %1 : vector<4x1xf32> to vector<4x128xf32>
    %20 = arith.addf %18, %19 : vector<4x128xf32>
    %c0_12 = arith.constant 0 : index
    %c0_13 = arith.constant 0 : index
    %21 = arith.index_cast %11 : i32 to index
    %22 = vector.load %arg2[%c0_12, %c0_13, %21] : memref<1x4x256xf32, #tpu.memory_space<vmem>>, vector<1x4x128xf32>
    %23 = vector.shape_cast %22 : vector<1x4x128xf32> to vector<4x128xf32>
    %24 = vector.extract_strided_slice %23 {offsets = [0, 112], sizes = [4, 16], strides = [1, 1]} : vector<4x128xf32> to vector<4x16xf32>
    %cst_14 = arith.constant dense<0.000000e+00> : vector<4x16xf32>
    %25 = tpu.matmul %0, %24, %cst_14 {dimension_numbers = #tpu.dot_dimension_numbers<[1], [0], [0], [1], [0, 0, 1, 1], [], []>} : vector<4x4xf32>, vector<4x16xf32>, vector<4x16xf32> -> vector<4x16xf32>
    %26 = vector.broadcast %1 : vector<4x1xf32> to vector<4x16xf32>
    %27 = arith.addf %25, %26 : vector<4x16xf32>
    %c0_i32_15 = arith.constant 0 : i32
    %28 = arith.cmpi eq, %arg1, %c0_i32_15 : i32
    %cst_16 = arith.constant 0.000000e+00 : f32
    %29 = vector.broadcast %cst_16 : f32 to vector<4x16xf32>
    %30 = arith.select %28, %29, %27 : vector<4x16xf32>
    %c0_17 = arith.constant 0 : index
    %c0_18 = arith.constant 0 : index
    %31 = arith.index_cast %14 : i32 to index
    %32 = vector.load %arg2[%c0_17, %c0_18, %31] : memref<1x4x256xf32, #tpu.memory_space<vmem>>, vector<1x4x128xf32>
    %33 = vector.shape_cast %32 : vector<1x4x128xf32> to vector<4x128xf32>
    %34 = vector.extract_strided_slice %33 {offsets = [0, 0], sizes = [4, 16], strides = [1, 1]} : vector<4x128xf32> to vector<4x16xf32>
    %cst_19 = arith.constant dense<0.000000e+00> : vector<4x16xf32>
    %35 = tpu.matmul %0, %34, %cst_19 {dimension_numbers = #tpu.dot_dimension_numbers<[1], [0], [0], [1], [0, 0, 1, 1], [], []>} : vector<4x4xf32>, vector<4x16xf32>, vector<4x16xf32> -> vector<4x16xf32>
    %36 = vector.broadcast %1 : vector<4x1xf32> to vector<4x16xf32>
    %37 = arith.addf %35, %36 : vector<4x16xf32>
    %c1_i32 = arith.constant 1 : i32
    %38 = arith.cmpi eq, %arg1, %c1_i32 : i32
    %cst_20 = arith.constant 0.000000e+00 : f32
    %39 = vector.broadcast %cst_20 : f32 to vector<4x16xf32>
    %40 = arith.select %38, %39, %37 : vector<4x16xf32>
    %41 = tpu.concatenate %30, %20, %40 in 1 : vector<4x16xf32>, vector<4x128xf32>, vector<4x16xf32> -> vector<4x160xf32>
    %42 = vector.extract_strided_slice %41 {offsets = [0, 0], sizes = [4, 128], strides = [1, 1]} : vector<4x160xf32> to vector<4x128xf32>
    %43 = vector.extract_strided_slice %41 {offsets = [0, 32], sizes = [4, 128], strides = [1, 1]} : vector<4x160xf32> to vector<4x128xf32>
    %44 = tpu.iota {dimensions = array<i32: 1>} : vector<1x128xi32>
    %c16_i32 = arith.constant 16 : i32
    %c0_i32_21 = arith.constant 0 : i32
    %45 = arith.cmpi eq, %c16_i32, %c0_i32_21 : i32
    %c1_i32_22 = arith.constant 1 : i32
    %46 = arith.select %45, %c1_i32_22, %c16_i32 : i32
    %47 = vector.broadcast %46 : i32 to vector<1x128xi32>
    %48 = arith.remsi %44, %47 : vector<1x128xi32>
    %c0_i32_23 = arith.constant 0 : i32
    %49 = vector.broadcast %c0_i32_23 : i32 to vector<1x128xi32>
    %50 = arith.cmpi ne, %48, %49 : vector<1x128xi32>
    %c0_i32_24 = arith.constant 0 : i32
    %51 = vector.broadcast %c0_i32_24 : i32 to vector<1x128xi32>
    %52 = arith.cmpi slt, %48, %51 : vector<1x128xi32>
    %c0_i32_25 = arith.constant 0 : i32
    %53 = arith.cmpi slt, %46, %c0_i32_25 : i32
    %54 = vector.broadcast %53 : i1 to vector<1x128xi1>
    %55 = vector.broadcast %54 : vector<1x128xi1> to vector<1x128xi1>
    %56 = arith.xori %52, %55 : vector<1x128xi1>
    %57 = arith.andi %56, %50 : vector<1x128xi1>
    %58 = vector.broadcast %46 : i32 to vector<1x128xi32>
    %59 = arith.addi %48, %58 : vector<1x128xi32>
    %60 = arith.select %57, %59, %48 : vector<1x128xi1>, vector<1x128xi32>
    %c0_i32_26 = arith.constant 0 : i32
    %61 = vector.broadcast %c0_i32_26 : i32 to vector<1x128xi32>
    %62 = arith.cmpi ne, %60, %61 : vector<1x128xi32>
    %63 = vector.extract_strided_slice %41 {offsets = [0, 15], sizes = [4, 128], strides = [1, 1]} : vector<4x160xf32> to vector<4x128xf32>
    %cst_27 = arith.constant 0.000000e+00 : f32
    %64 = vector.shape_cast %62 : vector<1x128xi1> to vector<1x128xi1>
    %65 = vector.broadcast %64 : vector<1x128xi1> to vector<4x128xi1>
    %66 = vector.broadcast %cst_27 : f32 to vector<4x128xf32>
    %67 = arith.select %65, %63, %66 : vector<4x128xi1>, vector<4x128xf32>
    %c15_i32 = arith.constant 15 : i32
    %68 = vector.broadcast %c15_i32 : i32 to vector<1x128xi32>
    %69 = arith.cmpi ne, %60, %68 : vector<1x128xi32>
    %70 = vector.extract_strided_slice %41 {offsets = [0, 17], sizes = [4, 128], strides = [1, 1]} : vector<4x160xf32> to vector<4x128xf32>
    %cst_28 = arith.constant 0.000000e+00 : f32
    %71 = vector.shape_cast %69 : vector<1x128xi1> to vector<1x128xi1>
    %72 = vector.broadcast %71 : vector<1x128xi1> to vector<4x128xi1>
    %73 = vector.broadcast %cst_28 : f32 to vector<4x128xf32>
    %74 = arith.select %72, %70, %73 : vector<4x128xi1>, vector<4x128xf32>
    %c0_29 = arith.constant 0 : index
    %c0_30 = arith.constant 0 : index
    %c0_31 = arith.constant 0 : index
    %75 = vector.load %arg6[%c0_29, %c0_30, %c0_31] : memref<6x4x4xf32, #tpu.memory_space<vmem>>, vector<1x4x4xf32>
    %76 = vector.shape_cast %75 : vector<1x4x4xf32> to vector<4x4xf32>
    %cst_32 = arith.constant dense<0.000000e+00> : vector<4x128xf32>
    %77 = tpu.matmul %76, %42, %cst_32 {dimension_numbers = #tpu.dot_dimension_numbers<[1], [0], [0], [1], [0, 0, 1, 1], [], []>} : vector<4x4xf32>, vector<4x128xf32>, vector<4x128xf32> -> vector<4x128xf32>
    %c1 = arith.constant 1 : index
    %c0_33 = arith.constant 0 : index
    %c0_34 = arith.constant 0 : index
    %78 = vector.load %arg6[%c1, %c0_33, %c0_34] : memref<6x4x4xf32, #tpu.memory_space<vmem>>, vector<1x4x4xf32>
    %79 = vector.shape_cast %78 : vector<1x4x4xf32> to vector<4x4xf32>
    %cst_35 = arith.constant dense<0.000000e+00> : vector<4x128xf32>
    %80 = tpu.matmul %79, %20, %cst_35 {dimension_numbers = #tpu.dot_dimension_numbers<[1], [0], [0], [1], [0, 0, 1, 1], [], []>} : vector<4x4xf32>, vector<4x128xf32>, vector<4x128xf32> -> vector<4x128xf32>
    %81 = arith.addf %77, %80 : vector<4x128xf32>
    %c2 = arith.constant 2 : index
    %c0_36 = arith.constant 0 : index
    %c0_37 = arith.constant 0 : index
    %82 = vector.load %arg6[%c2, %c0_36, %c0_37] : memref<6x4x4xf32, #tpu.memory_space<vmem>>, vector<1x4x4xf32>
    %83 = vector.shape_cast %82 : vector<1x4x4xf32> to vector<4x4xf32>
    %cst_38 = arith.constant dense<0.000000e+00> : vector<4x128xf32>
    %84 = tpu.matmul %83, %43, %cst_38 {dimension_numbers = #tpu.dot_dimension_numbers<[1], [0], [0], [1], [0, 0, 1, 1], [], []>} : vector<4x4xf32>, vector<4x128xf32>, vector<4x128xf32> -> vector<4x128xf32>
    %85 = arith.addf %81, %84 : vector<4x128xf32>
    %c0_39 = arith.constant 0 : index
    %c0_40 = arith.constant 0 : index
    %c0_41 = arith.constant 0 : index
    %86 = vector.load %arg7[%c0_39, %c0_40, %c0_41] : memref<2x4x1xf32, #tpu.memory_space<vmem>>, vector<1x4x1xf32>
    %87 = vector.shape_cast %86 : vector<1x4x1xf32> to vector<4x1xf32>
    %88 = vector.broadcast %87 : vector<4x1xf32> to vector<4x128xf32>
    %89 = arith.addf %85, %88 : vector<4x128xf32>
    %c3 = arith.constant 3 : index
    %c0_42 = arith.constant 0 : index
    %c0_43 = arith.constant 0 : index
    %90 = vector.load %arg6[%c3, %c0_42, %c0_43] : memref<6x4x4xf32, #tpu.memory_space<vmem>>, vector<1x4x4xf32>
    %91 = vector.shape_cast %90 : vector<1x4x4xf32> to vector<4x4xf32>
    %cst_44 = arith.constant dense<0.000000e+00> : vector<4x128xf32>
    %92 = tpu.matmul %91, %67, %cst_44 {dimension_numbers = #tpu.dot_dimension_numbers<[1], [0], [0], [1], [0, 0, 1, 1], [], []>} : vector<4x4xf32>, vector<4x128xf32>, vector<4x128xf32> -> vector<4x128xf32>
    %c4 = arith.constant 4 : index
    %c0_45 = arith.constant 0 : index
    %c0_46 = arith.constant 0 : index
    %93 = vector.load %arg6[%c4, %c0_45, %c0_46] : memref<6x4x4xf32, #tpu.memory_space<vmem>>, vector<1x4x4xf32>
    %94 = vector.shape_cast %93 : vector<1x4x4xf32> to vector<4x4xf32>
    %cst_47 = arith.constant dense<0.000000e+00> : vector<4x128xf32>
    %95 = tpu.matmul %94, %20, %cst_47 {dimension_numbers = #tpu.dot_dimension_numbers<[1], [0], [0], [1], [0, 0, 1, 1], [], []>} : vector<4x4xf32>, vector<4x128xf32>, vector<4x128xf32> -> vector<4x128xf32>
    %96 = arith.addf %92, %95 : vector<4x128xf32>
    %c5 = arith.constant 5 : index
    %c0_48 = arith.constant 0 : index
    %c0_49 = arith.constant 0 : index
    %97 = vector.load %arg6[%c5, %c0_48, %c0_49] : memref<6x4x4xf32, #tpu.memory_space<vmem>>, vector<1x4x4xf32>
    %98 = vector.shape_cast %97 : vector<1x4x4xf32> to vector<4x4xf32>
    %cst_50 = arith.constant dense<0.000000e+00> : vector<4x128xf32>
    %99 = tpu.matmul %98, %74, %cst_50 {dimension_numbers = #tpu.dot_dimension_numbers<[1], [0], [0], [1], [0, 0, 1, 1], [], []>} : vector<4x4xf32>, vector<4x128xf32>, vector<4x128xf32> -> vector<4x128xf32>
    %100 = arith.addf %96, %99 : vector<4x128xf32>
    %c1_51 = arith.constant 1 : index
    %c0_52 = arith.constant 0 : index
    %c0_53 = arith.constant 0 : index
    %101 = vector.load %arg7[%c1_51, %c0_52, %c0_53] : memref<2x4x1xf32, #tpu.memory_space<vmem>>, vector<1x4x1xf32>
    %102 = vector.shape_cast %101 : vector<1x4x1xf32> to vector<4x1xf32>
    %103 = vector.broadcast %102 : vector<4x1xf32> to vector<4x128xf32>
    %104 = arith.addf %100, %103 : vector<4x128xf32>
    %105 = arith.negf %89 : vector<4x128xf32>
    %106 = math.exp %105 : vector<4x128xf32>
    %cst_54 = arith.constant 1.000000e+00 : f32
    %107 = vector.broadcast %cst_54 : f32 to vector<4x128xf32>
    %108 = arith.addf %107, %106 : vector<4x128xf32>
    %109 = arith.divf %107, %108 : vector<4x128xf32>
    %110 = arith.negf %104 : vector<4x128xf32>
    %111 = math.exp %110 : vector<4x128xf32>
    %cst_55 = arith.constant 1.000000e+00 : f32
    %112 = vector.broadcast %cst_55 : f32 to vector<4x128xf32>
    %113 = arith.addf %112, %111 : vector<4x128xf32>
    %114 = arith.divf %112, %113 : vector<4x128xf32>
    %115 = arith.addf %109, %114 : vector<4x128xf32>
    %cst_56 = arith.constant 2.000000e+00 : f32
    %116 = vector.broadcast %cst_56 : f32 to vector<4x128xf32>
    %117 = arith.mulf %116, %20 : vector<4x128xf32>
    %118 = arith.mulf %115, %6 : vector<4x128xf32>
    %119 = arith.addf %117, %118 : vector<4x128xf32>
    %c0_57 = arith.constant 0 : index
    %c0_58 = arith.constant 0 : index
    %c0_59 = arith.constant 0 : index
    %120 = vector.load %arg8[%c0_57, %c0_58, %c0_59] : memref<1x4x128xf32, #tpu.memory_space<vmem>>, vector<1x4x128xf32>
    %121 = vector.shape_cast %120 : vector<1x4x128xf32> to vector<4x128xf32>
    %122 = vector.shape_cast %119 : vector<4x128xf32> to vector<1x4x128xf32>
    tpu.vector_store %arg8[%c0_57, %c0_58, %c0_59], %122 {strides = array<i32>} : memref<1x4x128xf32, #tpu.memory_space<vmem>>, vector<1x4x128xf32>,
    return
  }
  func.func @transform_0(%arg0: i32, %arg1: i32) -> (i32, i32, i32) {
    %c0_i32 = arith.constant 0 : i32
    %c0_i32_0 = arith.constant 0 : i32
    %c0_i32_1 = arith.constant 0 : i32
    return %arg0, %c0_i32, %c0_i32_0 : i32, i32, i32
  }
  func.func @transform_1(%arg0: i32, %arg1: i32) -> (i32, i32, i32) {
    %c0_i32 = arith.constant 0 : i32
    %c0_i32_0 = arith.constant 0 : i32
    return %arg0, %c0_i32, %arg1 : i32, i32, i32
  }
  func.func @transform_2(%arg0: i32, %arg1: i32) -> (i32, i32) {
    %c0_i32 = arith.constant 0 : i32
    %c0_i32_0 = arith.constant 0 : i32
    %c0_i32_1 = arith.constant 0 : i32
    return %c0_i32, %c0_i32_0 : i32, i32
  }
  func.func @transform_3(%arg0: i32, %arg1: i32) -> (i32, i32) {
    %c0_i32 = arith.constant 0 : i32
    %c0_i32_0 = arith.constant 0 : i32
    %c0_i32_1 = arith.constant 0 : i32
    return %c0_i32, %c0_i32_0 : i32, i32
  }
  func.func @transform_4(%arg0: i32, %arg1: i32) -> (i32, i32, i32) {
    %c0_i32 = arith.constant 0 : i32
    %c0_i32_0 = arith.constant 0 : i32
    %c0_i32_1 = arith.constant 0 : i32
    %c0_i32_2 = arith.constant 0 : i32
    return %c0_i32, %c0_i32_0, %c0_i32_1 : i32, i32, i32
  }
  func.func @transform_5(%arg0: i32, %arg1: i32) -> (i32, i32, i32) {
    %c0_i32 = arith.constant 0 : i32
    %c0_i32_0 = arith.constant 0 : i32
    %c0_i32_1 = arith.constant 0 : i32
    %c0_i32_2 = arith.constant 0 : i32
    return %c0_i32, %c0_i32_0, %c0_i32_1 : i32, i32, i32
  }
  func.func @transform_6(%arg0: i32, %arg1: i32) -> (i32, i32, i32) {
    %c0_i32 = arith.constant 0 : i32
    %c0_i32_0 = arith.constant 0 : i32
    return %arg0, %c0_i32, %arg1 : i32, i32, i32
  }
}

</mosaic_0001>

<llo_original>
// kernel: tpu_custom_call.1
$region0: #{tpu_custom_call.1}
  #allocation0 [shape = 'u32[]', space=smem, size = 0x4, offset = 0x4, fixed_abs, tag = 'smem constant byte address 0x4 - core index']
  #allocation1 [shape = 'u32[72,128]{1,0:T(1,128)}', space=vmem, size = 0x9000, scoped, tag = 'internal scratch']
  %s0 = inlined_call_operand.vmem [shape: f32[2,4,256], index: 0, kind: input, shape index: {}]
  %s1 = inlined_call_operand.vmem [shape: f32[2,4,256], index: 1, kind: input, shape index: {}]
  %s2 = inlined_call_operand.vmem [shape: f32[4,4], index: 2, kind: input, shape index: {}]
  %s3 = inlined_call_operand.vmem [shape: f32[4,1], index: 3, kind: input, shape index: {}]
  %s4 = inlined_call_operand.vmem [shape: f32[6,4,4], index: 4, kind: input, shape index: {}]
  %s5 = inlined_call_operand.vmem [shape: f32[2,4,1], index: 5, kind: input, shape index: {}]
  %s6 = inlined_call_operand.hbm [shape: f32[2,4,256], index: 6, kind: output, shape index: {}]
  %s7 = sld [smem:[#allocation0]]
  $region57: #{tpu_custom_call.1} parent=0
    _
  %s9 = ssub.s32 1, %s7
  %s10 = scalar_select 0, %s9, %s7
  $region1: #{tpu_custom_call.1} parent=0
    #allocation2 [shape = 'u8[4096]{0}', space=vmem, size = 0x1000, scoped, tag = 'output window, operand 0']
    #allocation3 [shape = 's32[2]{0}', space=sflag, size = 0x8, scoped, tag = 'scoped memory for tpu_custom_call.1']
    %11 = vsyncpa [#allocation3], 0
    %s12 = scalar_lea.sflag [#allocation3], 1
    %13 = vsyncpa %s12, 0
    loop: start=0, step=1, limit=6
    $region2: #{tpu_custom_call.1} parent=1 // loop_pre_header
      _
    $region3: #{tpu_custom_call.1} parent=1 // loop_header
      %s15 = sphi 0, %s19
      %p16 = scmp.ge.s32.totalorder %s15, 6
      %s22 = sphi 0, %s34
      %s23 = sphi 0, %s30
      %s24 = sphi 0, %s22
      %s25 = sphi 0, %s23
      %s26 = sphi 0, %s24
      %s27 = sphi 0, %s25
      %s37 = sphi 0, %s39
      %s40 = sphi 0, %s37
      %s41 = sphi 0, %s40
      %s57 = sphi 0, %s41
      %s65 = sphi 0, %s67
      %s68 = sphi 0, %s65
      %s69 = sphi 0, %s68
      %s85 = sphi 0, %s69
      %s89 = sphi 0, %s89
      %s91 = sphi 0, %s89
      %s92 = sphi 0, %s91
      %s106 = sphi 0, %s92
      %s110 = sphi 0, %s110
      %s112 = sphi 0, %s110
      %s113 = sphi 0, %s112
      %s127 = sphi 0, %s113
      %s131 = sphi 0, %s131
      %s133 = sphi 0, %s131
      %s134 = sphi 0, %s133
      %s148 = sphi 0, %s134
      %s152 = sphi 0, %s152
      %s154 = sphi 0, %s152
      %s155 = sphi 0, %s154
      %s169 = sphi 0, %s155
      %s177 = sphi 0, %s179
      %s180 = sphi 0, %s177
      %s181 = sphi 0, %s180
      %s197 = sphi 0, %s181
    $region4: #{tpu_custom_call.1} parent=1 // loop_header_branch
      %18 = sbr.rel (%p16) target = $region8
    $region5: #{tpu_custom_call.1} parent=1 // loop_body
      %s20 = ssub.s32 %s15, 1
      %s21 = ssub.s32 %s15, 2
      %s28 = sadd.s32 1, %s23
      %p29 = scmp.ge.s32.totalorder %s28, 2
      %s30 = scalar_select %p29, 0, %s28
      %s31 = sadd.s32 1, %s22
      %s32 = scalar_select %p29, %s31, %s22
      %p33 = scmp.ge.s32.totalorder %s32, 2
      %s34 = scalar_select %p33, 0, %s32
      %s35 = ssub.s32 %s22, %s34
      %p36 = scmp.eq.s32.totalorder %s35, 0
      %s38 = sadd.s32 %s37, 1
      %s39 = scalar_select %p36, %s37, %s38
      %p42 = pneg %p36
      %p43 = scmp.eq.s32.totalorder %s15, 3
      %p44 = por %p42, %p43
      %p45 = scmp.ne.s32.totalorder %s37, %s40
      %p46 = scmp.eq.s32.totalorder %s15, 0
      %p47 = por %p45, %p46
      %p48 = scmp.ne.s32.totalorder %s37, %s40
      %p49 = scmp.eq.s32.totalorder %s20, 3
      %p50 = por %p48, %p49
      %p51 = scmp.ne.s32.totalorder %s40, %s41
      %p52 = scmp.eq.s32.totalorder %s20, 0
      %p53 = por %p51, %p52
      %p54 = scmp.ne.s32.totalorder %s40, %s41
      %p55 = scmp.eq.s32.totalorder %s21, 3
      %p56 = por %p54, %p55
      %p58 = scmp.ne.s32.totalorder %s41, %s57
      %p59 = scmp.eq.s32.totalorder %s21, 0
      %p60 = por %p58, %p59
      %s61 = ssub.s32 %s22, %s34
      %s62 = ssub.s32 %s23, %s30
      %s63 = sor.u32 %s61, %s62
      %p64 = scmp.eq.s32.totalorder %s63, 0
      %s66 = sadd.s32 %s65, 1
      %s67 = scalar_select %p64, %s65, %s66
      %p70 = pneg %p64
      %p71 = scmp.eq.s32.totalorder %s15, 3
      %p72 = por %p70, %p71
      %p73 = scmp.ne.s32.totalorder %s65, %s68
      %p74 = scmp.eq.s32.totalorder %s15, 0
      %p75 = por %p73, %p74
      %p76 = scmp.ne.s32.totalorder %s65, %s68
      %p77 = scmp.eq.s32.totalorder %s20, 3
      %p78 = por %p76, %p77
      %p79 = scmp.ne.s32.totalorder %s68, %s69
      %p80 = scmp.eq.s32.totalorder %s20, 0
      %p81 = por %p79, %p80
      %p82 = scmp.ne.s32.totalorder %s68, %s69
      %p83 = scmp.eq.s32.totalorder %s21, 3
      %p84 = por %p82, %p83
      %p86 = scmp.ne.s32.totalorder %s69, %s85
      %p87 = scmp.eq.s32.totalorder %s21, 0
      %p88 = por %p86, %p87
      %s90 = sadd.s32 %s89, 1
      %p93 = scmp.eq.s32.totalorder %s15, 3
      %p94 = scmp.ne.s32.totalorder %s89, %s91
      %p95 = scmp.eq.s32.totalorder %s15, 0
      %p96 = por %p94, %p95
      %p97 = scmp.ne.s32.totalorder %s89, %s91
      %p98 = scmp.eq.s32.totalorder %s20, 3
      %p99 = por %p97, %p98
      %p100 = scmp.ne.s32.totalorder %s91, %s92
      %p101 = scmp.eq.s32.totalorder %s20, 0
      %p102 = por %p100, %p101
      %p103 = scmp.ne.s32.totalorder %s91, %s92
      %p104 = scmp.eq.s32.totalorder %s21, 3
      %p105 = por %p103, %p104
      %p107 = scmp.ne.s32.totalorder %s92, %s106
      %p108 = scmp.eq.s32.totalorder %s21, 0
      %p109 = por %p107, %p108
      %s111 = sadd.s32 %s110, 1
      %p114 = scmp.eq.s32.totalorder %s15, 3
      %p115 = scmp.ne.s32.totalorder %s110, %s112
      %p116 = scmp.eq.s32.totalorder %s15, 0
      %p117 = por %p115, %p116
      %p118 = scmp.ne.s32.totalorder %s110, %s112
      %p119 = scmp.eq.s32.totalorder %s20, 3
      %p120 = por %p118, %p119
      %p121 = scmp.ne.s32.totalorder %s112, %s113
      %p122 = scmp.eq.s32.totalorder %s20, 0
      %p123 = por %p121, %p122
      %p124 = scmp.ne.s32.totalorder %s112, %s113
      %p125 = scmp.eq.s32.totalorder %s21, 3
      %p126 = por %p124, %p125
      %p128 = scmp.ne.s32.totalorder %s113, %s127
      %p129 = scmp.eq.s32.totalorder %s21, 0
      %p130 = por %p128, %p129
      %s132 = sadd.s32 %s131, 1
      %p135 = scmp.eq.s32.totalorder %s15, 3
      %p136 = scmp.ne.s32.totalorder %s131, %s133
      %p137 = scmp.eq.s32.totalorder %s15, 0
      %p138 = por %p136, %p137
      %p139 = scmp.ne.s32.totalorder %s131, %s133
      %p140 = scmp.eq.s32.totalorder %s20, 3
      %p141 = por %p139, %p140
      %p142 = scmp.ne.s32.totalorder %s133, %s134
      %p143 = scmp.eq.s32.totalorder %s20, 0
      %p144 = por %p142, %p143
      %p145 = scmp.ne.s32.totalorder %s133, %s134
      %p146 = scmp.eq.s32.totalorder %s21, 3
      %p147 = por %p145, %p146
      %p149 = scmp.ne.s32.totalorder %s134, %s148
      %p150 = scmp.eq.s32.totalorder %s21, 0
      %p151 = por %p149, %p150
      %s153 = sadd.s32 %s152, 1
      %p156 = scmp.eq.s32.totalorder %s15, 3
      %p157 = scmp.ne.s32.totalorder %s152, %s154
      %p158 = scmp.eq.s32.totalorder %s15, 0
      %p159 = por %p157, %p158
      %p160 = scmp.ne.s32.totalorder %s152, %s154
      %p161 = scmp.eq.s32.totalorder %s20, 3
      %p162 = por %p160, %p161
      %p163 = scmp.ne.s32.totalorder %s154, %s155
      %p164 = scmp.eq.s32.totalorder %s20, 0
      %p165 = por %p163, %p164
      %p166 = scmp.ne.s32.totalorder %s154, %s155
      %p167 = scmp.eq.s32.totalorder %s21, 3
      %p168 = por %p166, %p167
      %p170 = scmp.ne.s32.totalorder %s155, %s169
      %p171 = scmp.eq.s32.totalorder %s21, 0
      %p172 = por %p170, %p171
      %s173 = ssub.s32 %s22, %s34
      %s174 = ssub.s32 %s23, %s30
      %s175 = sor.u32 %s173, %s174
      %p176 = scmp.eq.s32.totalorder %s175, 0
      %s178 = sadd.s32 %s177, 1
      %s179 = scalar_select %p176, %s177, %s178
      %p182 = pneg %p176
      %p183 = scmp.eq.s32.totalorder %s15, 3
      %p184 = por %p182, %p183
      %p185 = scmp.ne.s32.totalorder %s177, %s180
      %p186 = scmp.eq.s32.totalorder %s15, 0
      %p187 = por %p185, %p186
      %p188 = scmp.ne.s32.totalorder %s177, %s180
      %p189 = scmp.eq.s32.totalorder %s20, 3
      %p190 = por %p188, %p189
      %p191 = scmp.ne.s32.totalorder %s180, %s181
      %p192 = scmp.eq.s32.totalorder %s20, 0
      %p193 = por %p191, %p192
      %p194 = scmp.ne.s32.totalorder %s180, %s181
      %p195 = scmp.eq.s32.totalorder %s21, 3
      %p196 = por %p194, %p195
      %p198 = scmp.ne.s32.totalorder %s181, %s197
      %p199 = scmp.eq.s32.totalorder %s21, 0
      %p200 = por %p198, %p199
      %p201 = scmp.le.s32.totalorder 1, %s15
      %p202 = scmp.lt.s32.totalorder %s15, 5
      %p203 = pnand %p201, %p202
      %p204 = pneg %p203
      // Predicated region
      $region9: #{tpu_custom_call.1} parent=5 // pred_check
        _
      $region10: #{tpu_custom_call.1} parent=5 // pred_check_branch
        %206 = sbr.rel (%p203) target = $region12
      $region11: #{tpu_custom_call.1} parent=5 // pred_region
        %s207 = ssub.s32 %s15, 1
        // Predicated region
        $region13: #{tpu_custom_call.1} parent=11 // pred_check
          %p208 = pneg %p102
        $region14: #{tpu_custom_call.1} parent=11 // pred_check_branch
          %210 = sbr.rel (%p208) target = $region16
        $region15: #{tpu_custom_call.1} parent=11 // pred_region
          _
        $region16: #{tpu_custom_call.1} parent=11 // pred_fallthru
          _
        // Predicated region
        $region17: #{tpu_custom_call.1} parent=11 // pred_check
          %p211 = pneg %p123
        $region18: #{tpu_custom_call.1} parent=11 // pred_check_branch
          %213 = sbr.rel (%p211) target = $region20
        $region19: #{tpu_custom_call.1} parent=11 // pred_region
          _
        $region20: #{tpu_custom_call.1} parent=11 // pred_fallthru
          _
        // Predicated region
        $region21: #{tpu_custom_call.1} parent=11 // pred_check
          %p214 = pneg %p144
        $region22: #{tpu_custom_call.1} parent=11 // pred_check_branch
          %216 = sbr.rel (%p214) target = $region24
        $region23: #{tpu_custom_call.1} parent=11 // pred_region
          _
        $region24: #{tpu_custom_call.1} parent=11 // pred_fallthru
          _
        // Predicated region
        $region25: #{tpu_custom_call.1} parent=11 // pred_check
          %p217 = pneg %p165
        $region26: #{tpu_custom_call.1} parent=11 // pred_check_branch
          %219 = sbr.rel (%p217) target = $region28
        $region27: #{tpu_custom_call.1} parent=11 // pred_region
          _
        $region28: #{tpu_custom_call.1} parent=11 // pred_fallthru
          _
      $region12: #{tpu_custom_call.1} parent=5 // pred_fallthru
        _
      %p220 = scmp.lt.s32.totalorder %s15, 4
      // Predicated region
      $region29: #{tpu_custom_call.1} parent=5 // pred_check
        %p221 = pneg %p220
      $region30: #{tpu_custom_call.1} parent=5 // pred_check_branch
        %223 = sbr.rel (%p221) target = $region32
      $region31: #{tpu_custom_call.1} parent=5 // pred_region
        // Predicated region
        $region33: #{tpu_custom_call.1} parent=31 // pred_check
          %p224 = pneg %p47
        $region34: #{tpu_custom_call.1} parent=31 // pred_check_branch
          %226 = sbr.rel (%p224) target = $region36
        $region35: #{tpu_custom_call.1} parent=31 // pred_region
          %p227 = scmp.lt.s32.totalorder %s22, 1
          %s228 = scalar_select %p227, %s22, 1
          %s229 = smul.addr %s228, 2
          %s230 = smul.addr %s229, 4
          %s231 = scalar_lea.vmem %s0, %s230
        $region36: #{tpu_custom_call.1} parent=31 // pred_fallthru
          _
        // Predicated region
        $region37: #{tpu_custom_call.1} parent=31 // pred_check
          %p232 = pneg %p75
        $region38: #{tpu_custom_call.1} parent=31 // pred_check_branch
          %234 = sbr.rel (%p232) target = $region40
        $region39: #{tpu_custom_call.1} parent=31 // pred_region
          %p235 = scmp.lt.s32.totalorder %s22, 1
          %s236 = scalar_select %p235, %s22, 1
          %p237 = scmp.lt.s32.totalorder %s23, 1
          %s238 = scalar_select %p237, %s23, 1
          %s239 = smul.addr %s236, 2
          %s240 = sadd.s32 %s238, %s239
          %s241 = smul.addr %s240, 4
          %s242 = scalar_lea.vmem %s1, %s241
        $region40: #{tpu_custom_call.1} parent=31 // pred_fallthru
          _
      $region32: #{tpu_custom_call.1} parent=5 // pred_fallthru
        _
      %p243 = scmp.le.s32.totalorder 1, %s15
      %p244 = scmp.lt.s32.totalorder %s15, 5
      %p245 = pnand %p243, %p244
      %p246 = pneg %p245
      // Predicated region
      $region41: #{tpu_custom_call.1} parent=5 // pred_check
        _
      $region42: #{tpu_custom_call.1} parent=5 // pred_check_branch
        %248 = sbr.rel (%p245) target = $region44
      $region43: #{tpu_custom_call.1} parent=5 // pred_region
        %s249 = ssub.s32 %s15, 1
        %p250 = scmp.lt.s32.totalorder %s24, 1
        %s251 = scalar_select %p250, %s24, 1
        %s252 = smul.addr %s251, 2
        %s253 = smul.addr %s252, 4
        %s254 = scalar_lea.vmem %s0, %s253
        %p255 = pneg %p53
        %p256 = pneg %p50
        %p257 = scmp.lt.s32.totalorder %s24, 1
        %s258 = scalar_select %p257, %s24, 1
        %p259 = scmp.lt.s32.totalorder %s25, 1
        %s260 = scalar_select %p259, %s25, 1
        %s261 = smul.addr %s258, 2
        %s262 = sadd.s32 %s260, %s261
        %s263 = smul.addr %s262, 4
        %s264 = scalar_lea.vmem %s1, %s263
        %p265 = pneg %p81
        %p266 = pneg %p78
        %p267 = pneg %p102
        %p268 = pneg %p99
        %p269 = pneg %p123
        %p270 = pneg %p120
        %p271 = pneg %p144
        %p272 = pneg %p141
        %p273 = pneg %p165
        %p274 = pneg %p162
        %p275 = pneg %p193
        %p276 = pneg %p190
        %s277 = sand.u32 %s180, 1
        %s278 = scalar_lea.sflag [#allocation3], %s277
        %s279 = sand.u32 %s180, 1
        %s280 = smul.addr %s279, 4
        %s281 = scalar_lea.vmem [#allocation2], %s280
        %p282 = scmp.lt.s32.totalorder %s24, 1
        %s283 = scalar_select %p282, %s24, 1
        %s284 = smul.addr %s283, 2
        %s285 = smul.addr %s284, 4
        %s286 = scalar_lea.vmem %s0, %s285
        %p287 = scmp.lt.s32.totalorder %s24, 1
        %s288 = scalar_select %p287, %s24, 1
        %p289 = scmp.lt.s32.totalorder %s25, 1
        %s290 = scalar_select %p289, %s25, 1
        %s291 = smul.addr %s288, 2
        %s292 = sadd.s32 %s290, %s291
        %s293 = smul.addr %s292, 4
        %s294 = scalar_lea.vmem %s1, %s293
        %v295 = vld [vmem:[%s2] sm:$0xf]
        %v296 = vld [vmem:[%s3] sm:$0xf]
        %v297 = vld [vmem:[%s294] sm:$0xf]
        %299 = vset.pattern.permute.xlu0 0
        %300 = vperm.xlu0 %299, %v296
        %v301 = vpop.permute.xlu0 %300
        %vm303 = vcmask 31744
        %v305 = vsel %vm303, %v295, 0
        %vm307 = vcmask 1043456
        %v309 = vsel %vm307, %v297, 0
        %311 = vmatpush.msra.mxu0 0.0
        %312 = vmatpush.msra.mxu0 0.0
        %313 = vmatpush.msra.mxu0 0.0
        %314 = vmatpush.msra.mxu0 0.0
        %315 = vmatpush.msra.mxu0 0.0
        %316 = vmatpush.msra.mxu0 0.0
        %317 = vmatpush.msra.mxu0 0.0
        %318 = vmatpush.msra.mxu0 0.0
        %319 = vmatpush.msra.mxu0 0.0
        %320 = vmatpush.msra.mxu0 0.0
        %321 = vmatpush.msra.mxu0 0.0
        %322 = vmatpush.msra.mxu0 0.0
        %323 = vmatpush.msra.mxu0 0.0
        %324 = vmatpush.msra.mxu0 0.0
        %325 = vmatpush.msra.mxu0 0.0
        %326 = vmatpush.msra.mxu0 %v309
        %327 = vmatmul.f32.gmra.mxu0 %v305
        %v328 = vpop.f32.mrf.mxu0
        %v329 = vadd.f32 %v301, %v328
        %330 = vdwg.mxu0
        %s331 = smul.u32 %s25, 128
        %s332 = ssub.s32 %s331, 128
        %p333 = scmp.gt.s32.totalorder %s332, 0
        %s334 = scalar_select %p333, %s332, 0
        %s335 = sadd.s32 %s331, 128
        %p336 = scmp.lt.s32.totalorder %s335, 128
        %s337 = scalar_select %p336, %s335, 128
        %s338 = sshra.s32 %s331, 7
        %s339 = sand.u32 %s331, 127
        %s340 = smul.addr %s338, 4
        %s341 = scalar_lea.vmem %s286, %s340
        %v342 = vld [vmem:[%s341] sm:$0xf]
        %v344 = vsel %vm307, %v342, 0
        %346 = vmatpush.msra.mxu0 0.0
        %347 = vmatpush.msra.mxu0 0.0
        %348 = vmatpush.msra.mxu0 0.0
        %349 = vmatpush.msra.mxu0 0.0
        %350 = vmatpush.msra.mxu0 0.0
        %351 = vmatpush.msra.mxu0 0.0
        %352 = vmatpush.msra.mxu0 0.0
        %353 = vmatpush.msra.mxu0 0.0
        %354 = vmatpush.msra.mxu0 0.0
        %355 = vmatpush.msra.mxu0 0.0
        %356 = vmatpush.msra.mxu0 0.0
        %357 = vmatpush.msra.mxu0 0.0
        %358 = vmatpush.msra.mxu0 0.0
        %359 = vmatpush.msra.mxu0 0.0
        %360 = vmatpush.msra.mxu0 0.0
        %361 = vmatpush.msra.mxu0 %v344
        %362 = vmatmul.f32.gmra.mxu0 %v305
        %v363 = vpop.f32.mrf.mxu0
        %v364 = vadd.f32 %v301, %v363
        %365 = vdwg.mxu0
        %s366 = sshra.s32 %s334, 7
        %s367 = sand.u32 %s334, 127
        %s368 = smul.addr %s366, 4
        %s369 = scalar_lea.vmem %s286, %s368
        %v370 = vld [vmem:[%s369] sm:$0xf]
        %372 = vst [vmem:[#allocation1] ss:$2 sm:$0xff] %v370
        %v373 = vld.sshfl [vmem:[#allocation1] sm:$0xff pattern:$0x75316420]
        %374 = vrot.lane.b32.xlu0 %v373, 16
        %v375 = vpop.permute.xlu0 %374
        %v376 = vsel %vm307, %v375, 0
        %378 = vmatpush.msra.mxu0 0.0
        %379 = vmatpush.msra.mxu0 0.0
        %380 = vmatpush.msra.mxu0 0.0
        %381 = vmatpush.msra.mxu0 0.0
        %382 = vmatpush.msra.mxu0 0.0
        %383 = vmatpush.msra.mxu0 0.0
        %384 = vmatpush.msra.mxu0 0.0
        %385 = vmatpush.msra.mxu0 0.0
        %386 = vmatpush.msra.mxu0 0.0
        %387 = vmatpush.msra.mxu0 0.0
        %388 = vmatpush.msra.mxu0 0.0
        %389 = vmatpush.msra.mxu0 0.0
        %390 = vmatpush.msra.mxu0 0.0
        %391 = vmatpush.msra.mxu0 0.0
        %392 = vmatpush.msra.mxu0 0.0
        %393 = vmatpush.msra.mxu0 %v376
        %394 = vmatmul.f32.gmra.mxu0 %v305
        %v395 = vpop.f32.mrf.mxu0
        %v396 = vadd.f32 %v301, %v395
        %397 = vdwg.mxu0
        %p398 = scmp.eq.s32.totalorder %s25, 0
        %s399 = scalar_select %p398, 1, 0
        %v400 = vstv %s399
        %vm401 = vcmp.eq.s32.totalorder %v400, 1
        %v402 = vsel %vm401, 0.0, %v396
        %s403 = sshra.s32 %s337, 7
        %s404 = sand.u32 %s337, 127
        %s405 = smul.addr %s403, 4
        %s406 = scalar_lea.vmem %s286, %s405
        %v407 = vld [vmem:[%s406] sm:$0xf]
        %v409 = vsel %vm307, %v407, 0
        %411 = vmatpush.msra.mxu0 0.0
        %412 = vmatpush.msra.mxu0 0.0
        %413 = vmatpush.msra.mxu0 0.0
        %414 = vmatpush.msra.mxu0 0.0
        %415 = vmatpush.msra.mxu0 0.0
        %416 = vmatpush.msra.mxu0 0.0
        %417 = vmatpush.msra.mxu0 0.0
        %418 = vmatpush.msra.mxu0 0.0
        %419 = vmatpush.msra.mxu0 0.0
        %420 = vmatpush.msra.mxu0 0.0
        %421 = vmatpush.msra.mxu0 0.0
        %422 = vmatpush.msra.mxu0 0.0
        %423 = vmatpush.msra.mxu0 0.0
        %424 = vmatpush.msra.mxu0 0.0
        %425 = vmatpush.msra.mxu0 0.0
        %426 = vmatpush.msra.mxu0 %v409
        %427 = vmatmul.f32.gmra.mxu0 %v305
        %v428 = vpop.f32.mrf.mxu0
        %v429 = vadd.f32 %v301, %v428
        %430 = vdwg.mxu0
        %p431 = scmp.eq.s32.totalorder %s25, 1
        %s432 = scalar_select %p431, 1, 0
        %v433 = vstv %s432
        %vm434 = vcmp.eq.s32.totalorder %v433, 1
        %v435 = vsel %vm434, 0.0, %v429
        %437 = vrot.lane.b32.xlu0 %v364, 16
        %v438 = vpop.permute.xlu0 %437
        %441 = vrot.lane.b32.xlu0 %v435, 16
        %v442 = vpop.permute.xlu0 %441
        %vm444 = vcmask 130048
        %v445 = vsel %vm444, %v402, %v438
        %v446 = vsel %vm444, %v438, %v442
        %v447 = vlaneseq
        %v448 = vand.u32 %v447, 127
        %vm449 = vcmp.lt.s32.totalorder %v448, 0
        %v450 = vsub.s32 0, %v448
        %v451 = vsel %vm449, %v450, %v448
        %v452 = vshrl.u32 %v451, 4
        %v453 = vand.u32 %v451, 15
        %v454 = vsub.s32 0, %v453
        %v455 = vsel %vm449, %v454, %v453
        %vm456 = vcmp.ne.s32.totalorder %v455, 0
        %vm457 = vcmp.lt.s32.totalorder %v455, 0
        %vm458 = vmand %vm457, %vm456
        %v459 = vadd.s32 %v455, 16
        %v460 = vsel %vm458, %v459, %v455
        %vm461 = vcmp.ne.s32.totalorder %v460, 0
        %v462 = vsel %vm461, 1, 0
        %vm463 = vcmp.eq.s32.totalorder %v462, 1
        %466 = vrot.lane.b32.xlu0 %v445, 113
        %v467 = vpop.permute.xlu0 %466
        %468 = vrot.lane.b32.xlu0 %v446, 113
        %v469 = vpop.permute.xlu0 %468
        %vm470 = vcmask 924672
        %v471 = vsel %vm470, %v467, %v469
        %v473 = vsel %vm463, %v471, 0.0
        %vm474 = vcmp.ne.s32.totalorder %v460, 15
        %v475 = vsel %vm474, 1, 0
        %vm476 = vcmp.eq.s32.totalorder %v475, 1
        %477 = vrot.lane.b32.xlu0 %v445, 111
        %v478 = vpop.permute.xlu0 %477
        %479 = vrot.lane.b32.xlu0 %v446, 111
        %v480 = vpop.permute.xlu0 %479
        %vm481 = vcmask 908288
        %v482 = vsel %vm481, %v478, %v480
        %v484 = vsel %vm476, %v482, 0.0
        %v485 = vld [vmem:[%s4] sm:$0xf]
        %s486 = scalar_lea.vmem %s4, 4
        %v487 = vld [vmem:[%s486] sm:$0xf]
        %v489 = vsel %vm303, %v487, 0
        %v491 = vsel %vm307, %v364, 0
        %493 = vmatpush.msra.mxu0 0.0
        %494 = vmatpush.msra.mxu0 0.0
        %495 = vmatpush.msra.mxu0 0.0
        %496 = vmatpush.msra.mxu0 0.0
        %497 = vmatpush.msra.mxu0 0.0
        %498 = vmatpush.msra.mxu0 0.0
        %499 = vmatpush.msra.mxu0 0.0
        %500 = vmatpush.msra.mxu0 0.0
        %501 = vmatpush.msra.mxu0 0.0
        %502 = vmatpush.msra.mxu0 0.0
        %503 = vmatpush.msra.mxu0 0.0
        %504 = vmatpush.msra.mxu0 0.0
        %505 = vmatpush.msra.mxu0 0.0
        %506 = vmatpush.msra.mxu0 0.0
        %507 = vmatpush.msra.mxu0 0.0
        %508 = vmatpush.msra.mxu0 %v491
        %509 = vmatmul.f32.gmra.mxu0 %v489
        %v510 = vpop.f32.mrf.mxu0
        %v511 = vadd.f32 0.0, %v510
        %512 = vdwg.mxu0
        %v514 = vsel %vm303, %v485, 0
        %v516 = vsel %vm307, %v445, 0
        %518 = vmatpush.msra.mxu0 0.0
        %519 = vmatpush.msra.mxu0 0.0
        %520 = vmatpush.msra.mxu0 0.0
        %521 = vmatpush.msra.mxu0 0.0
        %522 = vmatpush.msra.mxu0 0.0
        %523 = vmatpush.msra.mxu0 0.0
        %524 = vmatpush.msra.mxu0 0.0
        %525 = vmatpush.msra.mxu0 0.0
        %526 = vmatpush.msra.mxu0 0.0
        %527 = vmatpush.msra.mxu0 0.0
        %528 = vmatpush.msra.mxu0 0.0
        %529 = vmatpush.msra.mxu0 0.0
        %530 = vmatpush.msra.mxu0 0.0
        %531 = vmatpush.msra.mxu0 0.0
        %532 = vmatpush.msra.mxu0 0.0
        %533 = vmatpush.msra.mxu0 %v516
        %534 = vmatmul.f32.gmra.mxu0 %v514
        %v535 = vpop.f32.mrf.mxu0
        %v536 = vadd.f32 %v511, %v535
        %537 = vdwg.mxu0
        %s538 = scalar_lea.vmem %s4, 8
        %v539 = vld [vmem:[%s538] sm:$0xf]
        %540 = vrot.lane.b32.xlu0 %v445, 96
        %v541 = vpop.permute.xlu0 %540
        %542 = vrot.lane.b32.xlu0 %v446, 96
        %v543 = vpop.permute.xlu0 %542
        %vm544 = vcmask 785408
        %v545 = vsel %vm544, %v541, %v543
        %v547 = vsel %vm303, %v539, 0
        %v549 = vsel %vm307, %v545, 0
        %551 = vmatpush.msra.mxu0 0.0
        %552 = vmatpush.msra.mxu0 0.0
        %553 = vmatpush.msra.mxu0 0.0
        %554 = vmatpush.msra.mxu0 0.0
        %555 = vmatpush.msra.mxu0 0.0
        %556 = vmatpush.msra.mxu0 0.0
        %557 = vmatpush.msra.mxu0 0.0
        %558 = vmatpush.msra.mxu0 0.0
        %559 = vmatpush.msra.mxu0 0.0
        %560 = vmatpush.msra.mxu0 0.0
        %561 = vmatpush.msra.mxu0 0.0
        %562 = vmatpush.msra.mxu0 0.0
        %563 = vmatpush.msra.mxu0 0.0
        %564 = vmatpush.msra.mxu0 0.0
        %565 = vmatpush.msra.mxu0 0.0
        %566 = vmatpush.msra.mxu0 %v549
        %567 = vmatmul.f32.gmra.mxu0 %v547
        %v568 = vpop.f32.mrf.mxu0
        %v569 = vadd.f32 0.0, %v568
        %570 = vdwg.mxu0
        %v571 = vadd.f32 %v536, %v569
        %v572 = vld [vmem:[%s5] sm:$0xf]
        %574 = vset.pattern.permute.xlu0 0
        %575 = vperm.xlu0 %574, %v572
        %v576 = vpop.permute.xlu0 %575
        %v578 = vadd.f32 %v571, %v576
        %s579 = scalar_lea.vmem %s4, 12
        %v580 = vld [vmem:[%s579] sm:$0xf]
        %s581 = scalar_lea.vmem %s4, 16
        %v582 = vld [vmem:[%s581] sm:$0xf]
        %v584 = vsel %vm303, %v582, 0
        %586 = vmatpush.msra.mxu0 0.0
        %587 = vmatpush.msra.mxu0 0.0
        %588 = vmatpush.msra.mxu0 0.0
        %589 = vmatpush.msra.mxu0 0.0
        %590 = vmatpush.msra.mxu0 0.0
        %591 = vmatpush.msra.mxu0 0.0
        %592 = vmatpush.msra.mxu0 0.0
        %593 = vmatpush.msra.mxu0 0.0
        %594 = vmatpush.msra.mxu0 0.0
        %595 = vmatpush.msra.mxu0 0.0
        %596 = vmatpush.msra.mxu0 0.0
        %597 = vmatpush.msra.mxu0 0.0
        %598 = vmatpush.msra.mxu0 0.0
        %599 = vmatpush.msra.mxu0 0.0
        %600 = vmatpush.msra.mxu0 0.0
        %601 = vmatpush.msra.mxu0 %v491
        %602 = vmatmul.f32.gmra.mxu0 %v584
        %v603 = vpop.f32.mrf.mxu0
        %v604 = vadd.f32 0.0, %v603
        %605 = vdwg.mxu0
        %v607 = vsel %vm303, %v580, 0
        %v610 = vsel %vm307, %v473, 0
        %612 = vmatpush.msra.mxu0 0.0
        %613 = vmatpush.msra.mxu0 0.0
        %614 = vmatpush.msra.mxu0 0.0
        %615 = vmatpush.msra.mxu0 0.0
        %616 = vmatpush.msra.mxu0 0.0
        %617 = vmatpush.msra.mxu0 0.0
        %618 = vmatpush.msra.mxu0 0.0
        %619 = vmatpush.msra.mxu0 0.0
        %620 = vmatpush.msra.mxu0 0.0
        %621 = vmatpush.msra.mxu0 0.0
        %622 = vmatpush.msra.mxu0 0.0
        %623 = vmatpush.msra.mxu0 0.0
        %624 = vmatpush.msra.mxu0 0.0
        %625 = vmatpush.msra.mxu0 0.0
        %626 = vmatpush.msra.mxu0 0.0
        %627 = vmatpush.msra.mxu0 %v610
        %628 = vmatmul.f32.gmra.mxu0 %v607
        %v629 = vpop.f32.mrf.mxu0
        %v630 = vadd.f32 %v604, %v629
        %631 = vdwg.mxu0
        %s632 = scalar_lea.vmem %s4, 20
        %v633 = vld [vmem:[%s632] sm:$0xf]
        %v635 = vsel %vm303, %v633, 0
        %v638 = vsel %vm307, %v484, 0
        %640 = vmatpush.msra.mxu0 0.0
        %641 = vmatpush.msra.mxu0 0.0
        %642 = vmatpush.msra.mxu0 0.0
        %643 = vmatpush.msra.mxu0 0.0
        %644 = vmatpush.msra.mxu0 0.0
        %645 = vmatpush.msra.mxu0 0.0
        %646 = vmatpush.msra.mxu0 0.0
        %647 = vmatpush.msra.mxu0 0.0
        %648 = vmatpush.msra.mxu0 0.0
        %649 = vmatpush.msra.mxu0 0.0
        %650 = vmatpush.msra.mxu0 0.0
        %651 = vmatpush.msra.mxu0 0.0
        %652 = vmatpush.msra.mxu0 0.0
        %653 = vmatpush.msra.mxu0 0.0
        %654 = vmatpush.msra.mxu0 0.0
        %655 = vmatpush.msra.mxu0 %v638
        %656 = vmatmul.f32.gmra.mxu0 %v635
        %v657 = vpop.f32.mrf.mxu0
        %v658 = vadd.f32 0.0, %v657
        %659 = vdwg.mxu0
        %v660 = vadd.f32 %v630, %v658
        %s661 = scalar_lea.vmem %s5, 4
        %v662 = vld [vmem:[%s661] sm:$0xf]
        %664 = vset.pattern.permute.xlu0 0
        %665 = vperm.xlu0 %664, %v662
        %v666 = vpop.permute.xlu0 %665
        %v668 = vadd.f32 %v660, %v666
        %v669 = vxor.u32 %v578, 2147483648
        %v670 = vmul.f32 %v669, 1.442695
        %v671 = vpow.pop %v670
        %v672 = vadd.f32 %v671, 1.0
        %v673 = vrcp.pop %v672
        %v674 = vmul.f32 %v672, %v673
        %v675 = vsub.f32 1.0, %v674
        %v676 = vmul.f32 %v673, %v675
        %v677 = vadd.f32 %v673, %v676
        %vm678 = vweird.f32 %v672
        %vm679 = vweird.f32 %v673
        %vm680 = vmor %vm678, %vm679
        %v681 = vsel %vm680, %v673, %v677
        %v682 = vand.u32 2147483647, %v672
        %vm683 = vcmp.eq.f32.partialorder %v682, 8.507059e+37
        %v684 = vand.u32 %v672, 2147483648
        %v685 = vor.u32 1.1754944e-38, %v684
        %v686 = vsel %vm683, %v685, %v681
        %v687 = vmul.f32 1.0, %v686
        %v688 = vxor.u32 %v668, 2147483648
        %v689 = vmul.f32 %v688, 1.442695
        %v690 = vpow.pop %v689
        %v691 = vadd.f32 %v690, 1.0
        %v692 = vrcp.pop %v691
        %v693 = vmul.f32 %v691, %v692
        %v694 = vsub.f32 1.0, %v693
        %v695 = vmul.f32 %v692, %v694
        %v696 = vadd.f32 %v692, %v695
        %vm697 = vweird.f32 %v691
        %vm698 = vweird.f32 %v692
        %vm699 = vmor %vm697, %vm698
        %v700 = vsel %vm699, %v692, %v696
        %v701 = vand.u32 2147483647, %v691
        %vm702 = vcmp.eq.f32.partialorder %v701, 8.507059e+37
        %v703 = vand.u32 %v691, 2147483648
        %v704 = vor.u32 1.1754944e-38, %v703
        %v705 = vsel %vm702, %v704, %v700
        %v706 = vmul.f32 1.0, %v705
        %v707 = vadd.f32 %v687, %v706
        %v708 = vmul.f32 %v364, 2.0
        %v709 = vmul.f32 %v707, %v329
        %v710 = vadd.f32 %v708, %v709
        %711 = vst [vmem:[%s281] sm:$0xf] %v710
        %s712 = sand.u32 %s180, 1
        %s713 = scalar_lea.sflag [#allocation3], %s712
        %s714 = sand.u32 %s180, 1
        %s715 = smul.addr %s714, 4
        %s716 = scalar_lea.vmem [#allocation2], %s715
        // Predicated region
        $region45: #{tpu_custom_call.1} parent=43 // pred_check
          %p717 = pneg %p190
        $region46: #{tpu_custom_call.1} parent=43 // pred_check_branch
          %719 = sbr.rel (%p717) target = $region48
        $region47: #{tpu_custom_call.1} parent=43 // pred_region
          %721 = vsyncadd %s713, 0
          %s722 = smul.addr %s24, 2
          %s723 = sadd.s32 %s25, %s722
          %s724 = smul.addr %s723, 4
          %s725 = scalar_lea.hbm %s6, %s724
          %s727 = sshll.u32 %s716, 4
          %s728 = int_to_ptr.vmem [resolvable:$true] %s727
          %s729 = sshll.u32 %s725, 4
          %s730 = int_to_ptr.hbm [resolvable:$true] %s729
          %732 = dma.vmem_to_hbm [thread:$0]  %s728, 64, %s730, %s713
        $region48: #{tpu_custom_call.1} parent=43 // pred_fallthru
          _
      $region44: #{tpu_custom_call.1} parent=5 // pred_fallthru
        _
      %p733 = scmp.le.s32.totalorder 2, %s15
      // Predicated region
      $region49: #{tpu_custom_call.1} parent=5 // pred_check
        %p734 = pneg %p733
      $region50: #{tpu_custom_call.1} parent=5 // pred_check_branch
        %736 = sbr.rel (%p734) target = $region52
      $region51: #{tpu_custom_call.1} parent=5 // pred_region
        %s737 = ssub.s32 %s15, 2
        // Predicated region
        $region53: #{tpu_custom_call.1} parent=51 // pred_check
          %p738 = pneg %p196
        $region54: #{tpu_custom_call.1} parent=51 // pred_check_branch
          %740 = sbr.rel (%p738) target = $region56
        $region55: #{tpu_custom_call.1} parent=51 // pred_region
          %s741 = sand.u32 %s181, 1
          %s742 = scalar_lea.sflag [#allocation3], %s741
          %s743 = sand.u32 %s181, 1
          %s744 = smul.addr %s743, 4
          %s745 = scalar_lea.vmem [#allocation2], %s744
          %747 = dma.done %s742, 64
        $region56: #{tpu_custom_call.1} parent=51 // pred_fallthru
          _
      $region52: #{tpu_custom_call.1} parent=5 // pred_fallthru
        _
    $region6: #{tpu_custom_call.1} parent=1 // loop_footer
      %s19 = sadd.s32 1, %s15
    $region7: #{tpu_custom_call.1} parent=1 // loop_footer_branch
      %14 = sbr.rel target = $region3
    $region8: #{tpu_custom_call.1} parent=1 // loop_exit
      _
    %748 = vsyncpa [#allocation3], 1
    %s749 = scalar_lea.sflag [#allocation3], 1
    %750 = vsyncpa %s749, 1

</llo_original>
